<compile_context>
chip_gen: v7x
topology: tpu7x:2x2x1
jax: 0.10.0
libtpu: 0.0.40
codegen_flags: <defaults>
</compile_context>

<pallas_src>
import functools

import jax
import jax.numpy as jnp
import numpy as np
from jax.experimental import pallas as pl
from jax.experimental.pallas import tpu as pltpu

_SUB = 8          # sublane granularity
_PACK = 8         # batch rows packed per physical row


def _round_up(a, b):
    return ((a + b - 1) // b) * b


def _mlp_mse_kernel(x_ref, y_ref,
                    w1_ref, b1_ref, w2_ref, b2_ref, out_std_ref,
                    partial_ref,
                    *, batch, d_out, pack, tile, mask_tail):
    i = pl.program_id(0)

    # Input normalization already folded into (w1, b1) by the wrapper; 8 batch rows
    # are packed per physical row, weights are block-diagonal replicas.
    x = x_ref[...]                                                  # (tile, pack*Din)

    h = jnp.dot(x, w1_ref[...], preferred_element_type=jnp.float32) + b1_ref[...]
    h = jnp.maximum(h, 0.0)                                         # (tile, pack*H)
    pred = jnp.dot(h, w2_ref[...], preferred_element_type=jnp.float32) + b2_ref[...]

    # Target un-normalization (out_mean already folded into b2 as b2 - out_mean).
    tgt = y_ref[...] * out_std_ref[...]                             # (tile, pack*Dout)

    diff = pred - tgt
    sq = diff * diff

    if mask_tail:
        last = pl.num_programs(0) - 1

        @pl.when(i == last)
        def _():
            # Zero contributions from rows padded up to the tile/pack boundary.
            prow = jax.lax.broadcasted_iota(jnp.int32, sq.shape, 0) + i * tile
            lane = jax.lax.broadcasted_iota(jnp.int32, sq.shape, 1)
            orig_row = prow * pack + lane // d_out
            masked = jnp.where(orig_row < batch, sq, 0.0)
            partial_ref[...] = jnp.reshape(jnp.sum(masked), (1, 1, 1))

        @pl.when(i != last)
        def _():
            partial_ref[...] = jnp.reshape(jnp.sum(sq), (1, 1, 1))
    else:
        partial_ref[...] = jnp.reshape(jnp.sum(sq), (1, 1, 1))


def mlp_model_loss(x, y, params, *, packed_tile=None):
    """Fused Pallas implementation of MLPModel.forward(inputs, outputs)."""
    x = x.astype(jnp.float32)
    y = y.astype(jnp.float32)

    B, Din = x.shape
    _, Dout = y.shape
    H = params["w1"].shape[1]
    P = _PACK

    # ---- fold the input normalizer into the first Linear (tiny wrapper ops) ----
    inv_std = 1.0 / params["in_std"].astype(jnp.float32)                  # (1, Din)
    w1f = params["w1"].astype(jnp.float32) * jnp.transpose(inv_std)        # (Din, H)
    b1f = (params["b1"].astype(jnp.float32)
           - (params["in_mean"].astype(jnp.float32) * inv_std) @ params["w1"].astype(jnp.float32))
    # ---- fold out_mean into b2: (pred - (y*std + mean)) == ((pred - mean) - y*std)
    b2f = params["b2"].astype(jnp.float32) - params["out_mean"].astype(jnp.float32)

    # ---- 8-row lane packing: block-diagonal weights, feature-tiled biases/stats ----
    eye = jnp.eye(P, dtype=jnp.float32)
    w1_blk = jnp.kron(eye, w1f)                                   # (P*Din, P*H)
    w2_blk = jnp.kron(eye, params["w2"].astype(jnp.float32))      # (P*H, P*Dout)
    b1_t = jnp.tile(b1f, (1, P))                                  # (1, P*H)
    b2_t = jnp.tile(b2f, (1, P))                                  # (1, P*Dout)
    out_std_t = jnp.tile(params["out_std"].astype(jnp.float32), (1, P))   # (1, P*Dout)

    Rp = _round_up(B, P) // P                                     # packed rows needed

    # ---- tile sizing (packed rows), VMEM-budgeted with lane-padded widths ----
    xw = _round_up(P * Din, 128)
    yw = _round_up(P * Dout, 128)
    hw = _round_up(P * H, 128)
    # double-buffered x/y tiles + h intermediate + pred/tgt/diff headroom (f32)
    bytes_per_prow = 4 * (2 * (xw + yw) + hw + 3 * yw + xw)
    data_budget = 28 * 1024 * 1024
    cap = max(_SUB, data_budget // bytes_per_prow)

    if packed_tile is not None:
        tile = max(1, min(int(packed_tile), Rp))
    else:
        tile = min(Rp, cap)
        # Large batch: guarantee >= 2 grid steps so both v7x TensorCores get work.
        if Rp * P >= 4096:
            tile = min(tile, _round_up(-(-Rp // 2), _SUB))

    if tile < Rp:
        tile = max(_SUB, (tile // _SUB) * _SUB)   # sublane-aligned blocks
    else:
        tile = Rp                                  # block == full array dim: always legal

    n_tiles = (Rp + tile - 1) // tile
    Rp_pad = n_tiles * tile
    B_pad = Rp_pad * P
    mask_tail = (B_pad != B)

    if B_pad != B:
        x = jnp.pad(x, ((0, B_pad - B), (0, 0)))
        y = jnp.pad(y, ((0, B_pad - B), (0, 0)))
    x_p = x.reshape(Rp_pad, P * Din)               # row-major: free reshape
    y_p = y.reshape(Rp_pad, P * Dout)

    kernel = functools.partial(
        _mlp_mse_kernel,
        batch=B, d_out=Dout, pack=P, tile=tile, mask_tail=mask_tail)

    full2d = lambda shape: pl.BlockSpec(shape, lambda i: (0, 0))

    partials = pl.pallas_call(
        kernel,
        out_shape=jax.ShapeDtypeStruct((n_tiles, 1, 1), jnp.float32),
        grid_spec=pltpu.PrefetchScalarGridSpec(
            num_scalar_prefetch=0,
            grid=(n_tiles,),
            in_specs=[
                pl.BlockSpec((tile, P * Din), lambda i: (i, 0)),    # packed x tile
                pl.BlockSpec((tile, P * Dout), lambda i: (i, 0)),   # packed y tile
                full2d((P * Din, P * H)),    # block-diag w1 (input normalizer folded)
                full2d((1, P * H)),          # tiled b1
                full2d((P * H, P * Dout)),   # block-diag w2
                full2d((1, P * Dout)),       # tiled b2 (out_mean folded)
                full2d((1, P * Dout)),       # tiled out_std
            ],
            out_specs=pl.BlockSpec((1, 1, 1), lambda i: (i, 0, 0)),
        ),
        compiler_params=pltpu.CompilerParams(
            dimension_semantics=("parallel",),
            vmem_limit_bytes=48 * 1024 * 1024),
    )(x_p, y_p, w1_blk, b1_t, w2_blk, b2_t, out_std_t)

    # Tiny cross-tile reduction + mean normalization in the wrapper.
    return jnp.sum(partials) / jnp.float32(B * Dout)


def _reference_loss(x, y, p):
    xn = (x - p["in_mean"]) / p["in_std"]
    h = jnp.maximum(xn @ p["w1"] + p["b1"], 0.0)
    pred = h @ p["w2"] + p["b2"]
    tgt = y * p["out_std"] + p["out_mean"]
    return jnp.mean((pred - tgt) ** 2)


def _make_params(key, Din, H, Dout):
    ks = jax.random.split(key, 8)
    return {
        "in_mean":  0.1 * jax.random.normal(ks[0], (1, Din), jnp.float32),
        "in_std":   1.0 + 0.1 * jax.random.uniform(ks[1], (1, Din), jnp.float32),
        "out_mean": 0.1 * jax.random.normal(ks[2], (1, Dout), jnp.float32),
        "out_std":  1.0 + 0.1 * jax.random.uniform(ks[3], (1, Dout), jnp.float32),
        "w1": jax.random.normal(ks[4], (Din, H), jnp.float32) / np.sqrt(Din),
        "b1": 0.01 * jax.random.normal(ks[5], (1, H), jnp.float32),
        "w2": jax.random.normal(ks[6], (H, Dout), jnp.float32) / np.sqrt(H),
        "b2": 0.01 * jax.random.normal(ks[7], (1, Dout), jnp.float32),
    }


if __name__ == "__main__":
    key = jax.random.PRNGKey(0)
    Din, H, Dout = 16, 32, 8
    kp, kx, ky, kx2, ky2 = jax.random.split(key, 5)
    params = _make_params(kp, Din, H, Dout)

    # Case 1: batch divisible by the pack factor, single tile.
    B = 64
    x = jax.random.normal(kx, (B, Din), jnp.float32)
    y = jax.random.normal(ky, (B, Dout), jnp.float32)
    loss = jax.block_until_ready(mlp_model_loss(x, y, params))
    ref = jax.block_until_ready(_reference_loss(x, y, params))
    np.testing.assert_allclose(np.asarray(loss), np.asarray(ref), rtol=1e-4, atol=1e-5)

    # Case 2: ragged batch + forced multi-tile path (exercises masking + parallel grid).
    B2 = 200
    x2 = jax.random.normal(kx2, (B2, Din), jnp.float32)
    y2 = jax.random.normal(ky2, (B2, Dout), jnp.float32)
    loss2 = jax.block_until_ready(mlp_model_loss(x2, y2, params, packed_tile=8))
    ref2 = jax.block_until_ready(_reference_loss(x2, y2, params))
    np.testing.assert_allclose(np.asarray(loss2), np.asarray(ref2), rtol=1e-4, atol=1e-5)

    print("KERNEL_OK")
</pallas_src>

<mosaic_0001>
module attributes {stable_mosaic.version = 11 : i64} {
  func.func @_mlp_mse_kernel(%arg0: i32, %arg1: memref<8x128xf32, #tpu.memory_space<vmem>>, %arg2: memref<8x64xf32, #tpu.memory_space<vmem>>, %arg3: memref<128x256xf32, #tpu.memory_space<vmem>>, %arg4: memref<1x256xf32, #tpu.memory_space<vmem>>, %arg5: memref<256x64xf32, #tpu.memory_space<vmem>>, %arg6: memref<1x64xf32, #tpu.memory_space<vmem>>, %arg7: memref<1x64xf32, #tpu.memory_space<vmem>>, %arg8: memref<1x1x1xf32, #tpu.memory_space<vmem>>) attributes {dimension_semantics = [#tpu.dimension_semantics<parallel>], iteration_bounds = array<i64: 1>, scalar_prefetch = 0 : i64, scratch_operands = 0 : i64, tpu.core_type = #tpu.core_type<tc>, window_params = [{transform_indices = @transform_0, window_bounds = array<i64: 8, 128>}, {transform_indices = @transform_1, window_bounds = array<i64: 8, 64>}, {pipeline_mode = #tpu.pipeline_mode<synchronous>, transform_indices = @transform_2, window_bounds = array<i64: 128, 256>}, {pipeline_mode = #tpu.pipeline_mode<synchronous>, transform_indices = @transform_3, window_bounds = array<i64: 1, 256>}, {pipeline_mode = #tpu.pipeline_mode<synchronous>, transform_indices = @transform_4, window_bounds = array<i64: 256, 64>}, {pipeline_mode = #tpu.pipeline_mode<synchronous>, transform_indices = @transform_5, window_bounds = array<i64: 1, 64>}, {pipeline_mode = #tpu.pipeline_mode<synchronous>, transform_indices = @transform_6, window_bounds = array<i64: 1, 64>}, {transform_indices = @transform_7, window_bounds = array<i64: 1, 1, 1>}]} {
    %c0 = arith.constant 0 : index
    %c0_0 = arith.constant 0 : index
    %0 = vector.load %arg1[%c0, %c0_0] : memref<8x128xf32, #tpu.memory_space<vmem>>, vector<8x128xf32>
    %c0_1 = arith.constant 0 : index
    %c0_2 = arith.constant 0 : index
    %1 = vector.load %arg3[%c0_1, %c0_2] : memref<128x256xf32, #tpu.memory_space<vmem>>, vector<128x256xf32>
    %cst = arith.constant dense<0.000000e+00> : vector<8x256xf32>
    %2 = tpu.matmul %0, %1, %cst {dimension_numbers = #tpu.dot_dimension_numbers<[1], [0], [0], [1], [0, 0, 1, 1], [], []>} : vector<8x128xf32>, vector<128x256xf32>, vector<8x256xf32> -> vector<8x256xf32>
    %c0_3 = arith.constant 0 : index
    %c0_4 = arith.constant 0 : index
    %3 = vector.load %arg4[%c0_3, %c0_4] : memref<1x256xf32, #tpu.memory_space<vmem>>, vector<1x256xf32>
    %4 = vector.broadcast %3 : vector<1x256xf32> to vector<8x256xf32>
    %5 = arith.addf %2, %4 : vector<8x256xf32>
    %cst_5 = arith.constant 0.000000e+00 : f32
    %6 = vector.broadcast %cst_5 : f32 to vector<8x256xf32>
    %7 = arith.maximumf %5, %6 : vector<8x256xf32>
    %c0_6 = arith.constant 0 : index
    %c0_7 = arith.constant 0 : index
    %8 = vector.load %arg5[%c0_6, %c0_7] : memref<256x64xf32, #tpu.memory_space<vmem>>, vector<256x64xf32>
    %cst_8 = arith.constant dense<0.000000e+00> : vector<8x64xf32>
    %9 = tpu.matmul %7, %8, %cst_8 {dimension_numbers = #tpu.dot_dimension_numbers<[1], [0], [0], [1], [0, 0, 1, 1], [], []>} : vector<8x256xf32>, vector<256x64xf32>, vector<8x64xf32> -> vector<8x64xf32>
    %c0_9 = arith.constant 0 : index
    %c0_10 = arith.constant 0 : index
    %10 = vector.load %arg6[%c0_9, %c0_10] : memref<1x64xf32, #tpu.memory_space<vmem>>, vector<1x64xf32>
    %11 = vector.broadcast %10 : vector<1x64xf32> to vector<8x64xf32>
    %12 = arith.addf %9, %11 : vector<8x64xf32>
    %c0_11 = arith.constant 0 : index
    %c0_12 = arith.constant 0 : index
    %13 = vector.load %arg2[%c0_11, %c0_12] : memref<8x64xf32, #tpu.memory_space<vmem>>, vector<8x64xf32>
    %c0_13 = arith.constant 0 : index
    %c0_14 = arith.constant 0 : index
    %14 = vector.load %arg7[%c0_13, %c0_14] : memref<1x64xf32, #tpu.memory_space<vmem>>, vector<1x64xf32>
    %15 = vector.broadcast %14 : vector<1x64xf32> to vector<8x64xf32>
    %16 = arith.mulf %13, %15 : vector<8x64xf32>
    %17 = arith.subf %12, %16 : vector<8x64xf32>
    %18 = arith.mulf %17, %17 : vector<8x64xf32>
    %19 = vector.shape_cast %18 : vector<8x64xf32> to vector<1x8x64xf32>
    %cst_15 = arith.constant dense<0.000000e+00> : vector<1xf32>
    %20 = vector.multi_reduction <add>, %19, %cst_15 [1, 2] : vector<1x8x64xf32> to vector<1xf32>
    %21 = vector.shape_cast %20 : vector<1xf32> to vector<1x1x1xf32>
    %22 = vector.extract %21[0, 0, 0] : f32 from vector<1x1x1xf32>
    %23 = vector.broadcast %22 : f32 to vector<1x1x1xf32>
    %c0_16 = arith.constant 0 : index
    %c0_17 = arith.constant 0 : index
    %c0_18 = arith.constant 0 : index
    %24 = vector.load %arg8[%c0_16, %c0_17, %c0_18] : memref<1x1x1xf32, #tpu.memory_space<vmem>>, vector<1x1x1xf32>
    tpu.vector_store %arg8[%c0_16, %c0_17, %c0_18], %23 {strides = array<i32>} : memref<1x1x1xf32, #tpu.memory_space<vmem>>, vector<1x1x1xf32>,
    return
  }
  func.func @transform_0(%arg0: i32) -> (i32, i32) {
    %c0_i32 = arith.constant 0 : i32
    %c0_i32_0 = arith.constant 0 : i32
    return %arg0, %c0_i32 : i32, i32
  }
  func.func @transform_1(%arg0: i32) -> (i32, i32) {
    %c0_i32 = arith.constant 0 : i32
    %c0_i32_0 = arith.constant 0 : i32
    return %arg0, %c0_i32 : i32, i32
  }
  func.func @transform_2(%arg0: i32) -> (i32, i32) {
    %c0_i32 = arith.constant 0 : i32
    %c0_i32_0 = arith.constant 0 : i32
    %c0_i32_1 = arith.constant 0 : i32
    return %c0_i32, %c0_i32_0 : i32, i32
  }
  func.func @transform_3(%arg0: i32) -> (i32, i32) {
    %c0_i32 = arith.constant 0 : i32
    %c0_i32_0 = arith.constant 0 : i32
    %c0_i32_1 = arith.constant 0 : i32
    return %c0_i32, %c0_i32_0 : i32, i32
  }
  func.func @transform_4(%arg0: i32) -> (i32, i32) {
    %c0_i32 = arith.constant 0 : i32
    %c0_i32_0 = arith.constant 0 : i32
    %c0_i32_1 = arith.constant 0 : i32
    return %c0_i32, %c0_i32_0 : i32, i32
  }
  func.func @transform_5(%arg0: i32) -> (i32, i32) {
    %c0_i32 = arith.constant 0 : i32
    %c0_i32_0 = arith.constant 0 : i32
    %c0_i32_1 = arith.constant 0 : i32
    return %c0_i32, %c0_i32_0 : i32, i32
  }
  func.func @transform_6(%arg0: i32) -> (i32, i32) {
    %c0_i32 = arith.constant 0 : i32
    %c0_i32_0 = arith.constant 0 : i32
    %c0_i32_1 = arith.constant 0 : i32
    return %c0_i32, %c0_i32_0 : i32, i32
  }
  func.func @transform_7(%arg0: i32) -> (i32, i32, i32) {
    %c0_i32 = arith.constant 0 : i32
    %c0_i32_0 = arith.constant 0 : i32
    %c0_i32_1 = arith.constant 0 : i32
    return %arg0, %c0_i32, %c0_i32_0 : i32, i32, i32
  }
}

</mosaic_0001>

<llo_original>
// kernel: tpu_custom_call.1
$region0: #{tpu_custom_call.1}
  #allocation0 [shape = 'u32[]', space=smem, size = 0x4, offset = 0x4, fixed_abs, tag = 'smem constant byte address 0x4 - core index']
  #allocation1 [shape = 'u32[144,128]{1,0:T(1,128)}', space=vmem, size = 0x12000, scoped, tag = 'internal scratch']
  %s0 = inlined_call_operand.vmem [shape: f32[8,128], index: 0, kind: input, shape index: {}]
  %s1 = inlined_call_operand.vmem [shape: f32[8,64], index: 1, kind: input, shape index: {}]
  %s2 = inlined_call_operand.vmem [shape: f32[128,256], index: 2, kind: input, shape index: {}]
  %s3 = inlined_call_operand.vmem [shape: f32[1,256], index: 3, kind: input, shape index: {}]
  %s4 = inlined_call_operand.vmem [shape: f32[256,64], index: 4, kind: input, shape index: {}]
  %s5 = inlined_call_operand.vmem [shape: f32[1,64], index: 5, kind: input, shape index: {}]
  %s6 = inlined_call_operand.vmem [shape: f32[1,64], index: 6, kind: input, shape index: {}]
  %s7 = inlined_call_operand.hbm [shape: f32[1,1,1], index: 7, kind: output, shape index: {}]
  %s8 = sld [smem:[#allocation0]]
  $region38: #{tpu_custom_call.1} parent=0
    _
  %s10 = ssub.s32 1, %s8
  %s11 = scalar_select 0, %s10, %s8
  $region1: #{tpu_custom_call.1} parent=0
    #allocation2 [shape = 'u8[512]{0}', space=vmem, size = 0x400, scoped, tag = 'output window, operand 0, single buffered']
    #allocation3 [shape = 's32[1]{0}', space=sflag, size = 0x4, scoped, tag = 'scoped memory for tpu_custom_call.1']
    %12 = vsyncpa [#allocation3], 0
    // Predicated region
    $region2: #{tpu_custom_call.1} parent=1 // pred_check
      _
    $region3: #{tpu_custom_call.1} parent=1 // pred_check_branch
      %14 = sbr.rel (0) target = $region5
    $region4: #{tpu_custom_call.1} parent=1 // pred_region
      _
    $region5: #{tpu_custom_call.1} parent=1 // pred_fallthru
      _
    // Predicated region
    $region6: #{tpu_custom_call.1} parent=1 // pred_check
      _
    $region7: #{tpu_custom_call.1} parent=1 // pred_check_branch
      %16 = sbr.rel (0) target = $region9
    $region8: #{tpu_custom_call.1} parent=1 // pred_region
      _
    $region9: #{tpu_custom_call.1} parent=1 // pred_fallthru
      _
    // Predicated region
    $region10: #{tpu_custom_call.1} parent=1 // pred_check
      _
    $region11: #{tpu_custom_call.1} parent=1 // pred_check_branch
      %18 = sbr.rel (0) target = $region13
    $region12: #{tpu_custom_call.1} parent=1 // pred_region
      _
    $region13: #{tpu_custom_call.1} parent=1 // pred_fallthru
      _
    // Predicated region
    $region14: #{tpu_custom_call.1} parent=1 // pred_check
      _
    $region15: #{tpu_custom_call.1} parent=1 // pred_check_branch
      %20 = sbr.rel (0) target = $region17
    $region16: #{tpu_custom_call.1} parent=1 // pred_region
      _
    $region17: #{tpu_custom_call.1} parent=1 // pred_fallthru
      _
    // Predicated region
    $region18: #{tpu_custom_call.1} parent=1 // pred_check
      _
    $region19: #{tpu_custom_call.1} parent=1 // pred_check_branch
      %22 = sbr.rel (0) target = $region21
    $region20: #{tpu_custom_call.1} parent=1 // pred_region
      _
    $region21: #{tpu_custom_call.1} parent=1 // pred_fallthru
      _
    // Predicated region
    $region22: #{tpu_custom_call.1} parent=1 // pred_check
      _
    $region23: #{tpu_custom_call.1} parent=1 // pred_check_branch
      %24 = sbr.rel (0) target = $region25
    $region24: #{tpu_custom_call.1} parent=1 // pred_region
      _
    $region25: #{tpu_custom_call.1} parent=1 // pred_fallthru
      _
    // Predicated region
    $region26: #{tpu_custom_call.1} parent=1 // pred_check
      _
    $region27: #{tpu_custom_call.1} parent=1 // pred_check_branch
      %26 = sbr.rel (0) target = $region29
    $region28: #{tpu_custom_call.1} parent=1 // pred_region
      _
    $region29: #{tpu_custom_call.1} parent=1 // pred_fallthru
      _
    %v27 = vld [vmem:[%s0] sm:$0xff]
    %v28 = vld [vmem:[%s2] sm:$0xff]
    %v29 = vld [vmem:[%s2 + $0x8] sm:$0xff]
    %v30 = vld [vmem:[%s2 + $0x10] sm:$0xff]
    %v31 = vld [vmem:[%s2 + $0x18] sm:$0xff]
    %v32 = vld [vmem:[%s2 + $0x20] sm:$0xff]
    %v33 = vld [vmem:[%s2 + $0x28] sm:$0xff]
    %v34 = vld [vmem:[%s2 + $0x30] sm:$0xff]
    %v35 = vld [vmem:[%s2 + $0x38] sm:$0xff]
    %v36 = vld [vmem:[%s2 + $0x40] sm:$0xff]
    %v37 = vld [vmem:[%s2 + $0x48] sm:$0xff]
    %v38 = vld [vmem:[%s2 + $0x50] sm:$0xff]
    %v39 = vld [vmem:[%s2 + $0x58] sm:$0xff]
    %v40 = vld [vmem:[%s2 + $0x60] sm:$0xff]
    %v41 = vld [vmem:[%s2 + $0x68] sm:$0xff]
    %v42 = vld [vmem:[%s2 + $0x70] sm:$0xff]
    %v43 = vld [vmem:[%s2 + $0x78] sm:$0xff]
    %v44 = vld [vmem:[%s2 + $0x80] sm:$0xff]
    %v45 = vld [vmem:[%s2 + $0x88] sm:$0xff]
    %v46 = vld [vmem:[%s2 + $0x90] sm:$0xff]
    %v47 = vld [vmem:[%s2 + $0x98] sm:$0xff]
    %v48 = vld [vmem:[%s2 + $0xa0] sm:$0xff]
    %v49 = vld [vmem:[%s2 + $0xa8] sm:$0xff]
    %v50 = vld [vmem:[%s2 + $0xb0] sm:$0xff]
    %v51 = vld [vmem:[%s2 + $0xb8] sm:$0xff]
    %v52 = vld [vmem:[%s2 + $0xc0] sm:$0xff]
    %v53 = vld [vmem:[%s2 + $0xc8] sm:$0xff]
    %v54 = vld [vmem:[%s2 + $0xd0] sm:$0xff]
    %v55 = vld [vmem:[%s2 + $0xd8] sm:$0xff]
    %v56 = vld [vmem:[%s2 + $0xe0] sm:$0xff]
    %v57 = vld [vmem:[%s2 + $0xe8] sm:$0xff]
    %v58 = vld [vmem:[%s2 + $0xf0] sm:$0xff]
    %v59 = vld [vmem:[%s2 + $0xf8] sm:$0xff]
    %v60 = vld [vmem:[%s3] sm:$0x3]
    %v62 = vlaneseq
    %v63 = vshrl.u32 %v62, 7
    %v64 = vsub.s32 0, %v63
    %v65 = vrot.slane %v60, %v64
    %v66 = vlaneseq
    %v67 = vshrl.u32 %v66, 7
    %v68 = vsub.s32 1, %v67
    %v69 = vrot.slane %v60, %v68
    %72 = vmatprep.subr.mxu0 %v29
    %73 = vmatpush1.msra.mxu0 %v28
    %74 = vmatprep.subr.mxu0 %v31
    %75 = vmatpush1.msra.mxu0 %v30
    %76 = vmatprep.subr.mxu0 %v33
    %77 = vmatpush1.msra.mxu0 %v32
    %78 = vmatprep.subr.mxu0 %v35
    %79 = vmatpush1.msra.mxu0 %v34
    %80 = vmatprep.subr.mxu0 %v37
    %81 = vmatpush1.msra.mxu0 %v36
    %82 = vmatprep.subr.mxu0 %v39
    %83 = vmatpush1.msra.mxu0 %v38
    %84 = vmatprep.subr.mxu0 %v41
    %85 = vmatpush1.msra.mxu0 %v40
    %86 = vmatprep.subr.mxu0 %v43
    %87 = vmatpush1.msra.mxu0 %v42
    %88 = vmatprep.subr.mxu0 %v45
    %89 = vmatpush1.msra.mxu0 %v44
    %90 = vmatprep.subr.mxu0 %v47
    %91 = vmatpush1.msra.mxu0 %v46
    %92 = vmatprep.subr.mxu0 %v49
    %93 = vmatpush1.msra.mxu0 %v48
    %94 = vmatprep.subr.mxu0 %v51
    %95 = vmatpush1.msra.mxu0 %v50
    %96 = vmatprep.subr.mxu0 %v53
    %97 = vmatpush1.msra.mxu0 %v52
    %98 = vmatprep.subr.mxu0 %v55
    %99 = vmatpush1.msra.mxu0 %v54
    %100 = vmatprep.subr.mxu0 %v57
    %101 = vmatpush1.msra.mxu0 %v56
    %102 = vmatprep.subr.mxu0 %v59
    %103 = vmatpush1.msra.mxu0 %v58
    %104 = vmatprep.subr.mxu0 0.0
    %105 = vmatpush1.msra.mxu0 0.0
    %106 = vmatprep.subr.mxu0 0.0
    %107 = vmatpush1.msra.mxu0 0.0
    %108 = vmatprep.subr.mxu0 0.0
    %109 = vmatpush1.msra.mxu0 0.0
    %110 = vmatprep.subr.mxu0 0.0
    %111 = vmatpush1.msra.mxu0 0.0
    %112 = vmatprep.subr.mxu0 0.0
    %113 = vmatpush1.msra.mxu0 0.0
    %114 = vmatprep.subr.mxu0 0.0
    %115 = vmatpush1.msra.mxu0 0.0
    %116 = vmatprep.subr.mxu0 0.0
    %117 = vmatpush1.msra.mxu0 0.0
    %118 = vmatprep.subr.mxu0 0.0
    %119 = vmatpush1.msra.mxu0 0.0
    %120 = vmatprep.subr.mxu0 0.0
    %121 = vmatpush1.msra.mxu0 0.0
    %122 = vmatprep.subr.mxu0 0.0
    %123 = vmatpush1.msra.mxu0 0.0
    %124 = vmatprep.subr.mxu0 0.0
    %125 = vmatpush1.msra.mxu0 0.0
    %126 = vmatprep.subr.mxu0 0.0
    %127 = vmatpush1.msra.mxu0 0.0
    %128 = vmatprep.subr.mxu0 0.0
    %129 = vmatpush1.msra.mxu0 0.0
    %130 = vmatprep.subr.mxu0 0.0
    %131 = vmatpush1.msra.mxu0 0.0
    %132 = vmatprep.subr.mxu0 0.0
    %133 = vmatpush1.msra.mxu0 0.0
    %134 = vmatprep.subr.mxu0 0.0
    %135 = vmatpush1.msra.mxu0 0.0
    %136 = vmatprep.mubr.f32.mxu0 0.0
    %137 = vmatmul.mubr.f32.gmra.mrb[0].mxu0 %v27
    %v138 = vpop.f32.mrb[0].mxu0
    %v139 = vadd.f32 %v65, %v138
    %v140 = vpop.f32.mrb[0].mxu0
    %v141 = vadd.f32 %v69, %v140
    %142 = vdwg.mxu0
    %v143 = vmax.f32 %v139, 0.0
    %v144 = vmax.f32 %v141, 0.0
    %v145 = vld [vmem:[%s4] sm:$0xff]
    %v146 = vld [vmem:[%s4 + $0x8] sm:$0xff]
    %v147 = vld [vmem:[%s4 + $0x10] sm:$0xff]
    %v148 = vld [vmem:[%s4 + $0x18] sm:$0xff]
    %v149 = vld [vmem:[%s4 + $0x20] sm:$0xff]
    %v150 = vld [vmem:[%s4 + $0x28] sm:$0xff]
    %v151 = vld [vmem:[%s4 + $0x30] sm:$0xff]
    %v152 = vld [vmem:[%s4 + $0x38] sm:$0xff]
    %v153 = vld [vmem:[%s4 + $0x40] sm:$0xff]
    %v154 = vld [vmem:[%s4 + $0x48] sm:$0xff]
    %v155 = vld [vmem:[%s4 + $0x50] sm:$0xff]
    %v156 = vld [vmem:[%s4 + $0x58] sm:$0xff]
    %v157 = vld [vmem:[%s4 + $0x60] sm:$0xff]
    %v158 = vld [vmem:[%s4 + $0x68] sm:$0xff]
    %v159 = vld [vmem:[%s4 + $0x70] sm:$0xff]
    %v160 = vld [vmem:[%s4 + $0x78] sm:$0xff]
    %v161 = vld [vmem:[%s4 + $0x80] sm:$0xff]
    %v162 = vld [vmem:[%s4 + $0x88] sm:$0xff]
    %v163 = vld [vmem:[%s4 + $0x90] sm:$0xff]
    %v164 = vld [vmem:[%s4 + $0x98] sm:$0xff]
    %v165 = vld [vmem:[%s4 + $0xa0] sm:$0xff]
    %v166 = vld [vmem:[%s4 + $0xa8] sm:$0xff]
    %v167 = vld [vmem:[%s4 + $0xb0] sm:$0xff]
    %v168 = vld [vmem:[%s4 + $0xb8] sm:$0xff]
    %v169 = vld [vmem:[%s4 + $0xc0] sm:$0xff]
    %v170 = vld [vmem:[%s4 + $0xc8] sm:$0xff]
    %v171 = vld [vmem:[%s4 + $0xd0] sm:$0xff]
    %v172 = vld [vmem:[%s4 + $0xd8] sm:$0xff]
    %v173 = vld [vmem:[%s4 + $0xe0] sm:$0xff]
    %v174 = vld [vmem:[%s4 + $0xe8] sm:$0xff]
    %v175 = vld [vmem:[%s4 + $0xf0] sm:$0xff]
    %v176 = vld [vmem:[%s4 + $0xf8] sm:$0xff]
    %v177 = vld [vmem:[%s5] sm:$0x1]
    %v179 = vlaneseq
    %v180 = vshrl.u32 %v179, 7
    %v181 = vsub.s32 0, %v180
    %v182 = vrot.slane %v177, %v181
    %184 = vmatprep.subr.mxu0 0.0
    %185 = vmatpush1.msra.mxu0 %v145
    %186 = vmatprep.subr.mxu0 0.0
    %187 = vmatpush1.msra.mxu0 %v146
    %188 = vmatprep.subr.mxu0 0.0
    %189 = vmatpush1.msra.mxu0 %v147
    %190 = vmatprep.subr.mxu0 0.0
    %191 = vmatpush1.msra.mxu0 %v148
    %192 = vmatprep.subr.mxu0 0.0
    %193 = vmatpush1.msra.mxu0 %v149
    %194 = vmatprep.subr.mxu0 0.0
    %195 = vmatpush1.msra.mxu0 %v150
    %196 = vmatprep.subr.mxu0 0.0
    %197 = vmatpush1.msra.mxu0 %v151
    %198 = vmatprep.subr.mxu0 0.0
    %199 = vmatpush1.msra.mxu0 %v152
    %200 = vmatprep.subr.mxu0 0.0
    %201 = vmatpush1.msra.mxu0 %v153
    %202 = vmatprep.subr.mxu0 0.0
    %203 = vmatpush1.msra.mxu0 %v154
    %204 = vmatprep.subr.mxu0 0.0
    %205 = vmatpush1.msra.mxu0 %v155
    %206 = vmatprep.subr.mxu0 0.0
    %207 = vmatpush1.msra.mxu0 %v156
    %208 = vmatprep.subr.mxu0 0.0
    %209 = vmatpush1.msra.mxu0 %v157
    %210 = vmatprep.subr.mxu0 0.0
    %211 = vmatpush1.msra.mxu0 %v158
    %212 = vmatprep.subr.mxu0 0.0
    %213 = vmatpush1.msra.mxu0 %v159
    %214 = vmatprep.subr.mxu0 0.0
    %215 = vmatpush1.msra.mxu0 %v160
    %216 = vmatprep.subr.mxu0 0.0
    %217 = vmatpush1.msra.mxu0 %v161
    %218 = vmatprep.subr.mxu0 0.0
    %219 = vmatpush1.msra.mxu0 %v162
    %220 = vmatprep.subr.mxu0 0.0
    %221 = vmatpush1.msra.mxu0 %v163
    %222 = vmatprep.subr.mxu0 0.0
    %223 = vmatpush1.msra.mxu0 %v164
    %224 = vmatprep.subr.mxu0 0.0
    %225 = vmatpush1.msra.mxu0 %v165
    %226 = vmatprep.subr.mxu0 0.0
    %227 = vmatpush1.msra.mxu0 %v166
    %228 = vmatprep.subr.mxu0 0.0
    %229 = vmatpush1.msra.mxu0 %v167
    %230 = vmatprep.subr.mxu0 0.0
    %231 = vmatpush1.msra.mxu0 %v168
    %232 = vmatprep.subr.mxu0 0.0
    %233 = vmatpush1.msra.mxu0 %v169
    %234 = vmatprep.subr.mxu0 0.0
    %235 = vmatpush1.msra.mxu0 %v170
    %236 = vmatprep.subr.mxu0 0.0
    %237 = vmatpush1.msra.mxu0 %v171
    %238 = vmatprep.subr.mxu0 0.0
    %239 = vmatpush1.msra.mxu0 %v172
    %240 = vmatprep.subr.mxu0 0.0
    %241 = vmatpush1.msra.mxu0 %v173
    %242 = vmatprep.subr.mxu0 0.0
    %243 = vmatpush1.msra.mxu0 %v174
    %244 = vmatprep.subr.mxu0 0.0
    %245 = vmatpush1.msra.mxu0 %v175
    %246 = vmatprep.subr.mxu0 0.0
    %247 = vmatpush1.msra.mxu0 %v176
    %248 = vmatprep.mubr.f32.mxu0 %v144
    %249 = vmatmul.mubr.f32.gmra.mrb[0].mxu0 %v143
    %v250 = vpop.f32.mrb[0].mxu0
    %v251 = vadd.f32 %v182, %v250
    %v252 = vpop.f32.mrb[0].mxu0
    %253 = vdwg.mxu0
    %v254 = vld [vmem:[%s1] sm:$0xff]
    %v255 = vld [vmem:[%s6] sm:$0x1]
    %v257 = vlaneseq
    %v258 = vshrl.u32 %v257, 7
    %v259 = vsub.s32 0, %v258
    %v260 = vrot.slane %v255, %v259
    %v262 = vmul.f32 %v254, %v260
    %v263 = vsub.f32 %v251, %v262
    %v264 = vmul.f32 %v263, %v263
    %vm265 = vcmask 523264
    %v266 = vsel %vm265, %v264, 0.0
    %267 = vadd.xlane.f32.xlu0 %v266
    %v268 = vpop.xlane.xlu0 %267
    %v269 = vrot.slane %v268, 4
    %v270 = vadd.f32 %v268, %v269
    %v271 = vrot.slane %v270, 2
    %v272 = vadd.f32 %v270, %v271
    %v273 = vrot.slane %v272, 1
    %v274 = vadd.f32 %v272, %v273
    %s275 = vtos %v274
    %v276 = vstv %s275
    %vm277 = vcmask 0
    %278 = vst.msk [vmem:[#allocation2] sm:$0x1] %vm277, %v276
    // Predicated region
    $region30: #{tpu_custom_call.1} parent=1 // pred_check
      _
    $region31: #{tpu_custom_call.1} parent=1 // pred_check_branch
      %280 = sbr.rel (0) target = $region33
    $region32: #{tpu_custom_call.1} parent=1 // pred_region
      %s282 = ssub.s32 16, 16
      %283 = vsyncadd [#allocation3], %s282
      %s285 = sshll.u32 [#allocation2], 4
      %s286 = int_to_ptr.vmem [resolvable:$true] %s285
      %288 = dma.vmem_to_hbm [thread:$0]  %s286, 16, %s7, [#allocation3]
    $region33: #{tpu_custom_call.1} parent=1 // pred_fallthru
      _
    // Predicated region
    $region34: #{tpu_custom_call.1} parent=1 // pred_check
      _
    $region35: #{tpu_custom_call.1} parent=1 // pred_check_branch
      %290 = sbr.rel (0) target = $region37
    $region36: #{tpu_custom_call.1} parent=1 // pred_region
      %291 = dma.done [#allocation3], 16
    $region37: #{tpu_custom_call.1} parent=1 // pred_fallthru
      _
    %292 = vsyncpa [#allocation3], 1

</llo_original>
